<compile_context>
chip_gen: v7x
topology: tpu7x:2x2x1
jax: 0.10.0
libtpu: 0.0.40
codegen_flags: <defaults>
</compile_context>

<pallas_src>
import math

import jax
import jax.numpy as jnp
from jax import lax
from jax.experimental import pallas as pl
from jax.experimental.pallas import tpu as pltpu


def _make_kernel(*, a, b, repulsion_strength, eps, nsr, batch):
    a = float(a)
    b = float(b)
    rep = float(repulsion_strength)
    clip_hi = -math.log(float(eps))          # max of -log(clip(., EPS, 1))
    log_a = math.log(a)
    inv_n_pairs = 1.0 / float(batch * (1 + nsr))
    inv_batch = 1.0 / float(batch)

    def kernel(emb_toT_ref, emb_fromT_ref, negT_ref, high_ref,
               umap_ref, global_ref, gram_acc, ce_acc):
        k = pl.program_id(0)
        nk = pl.num_programs(0)
        f32 = jnp.float32

        @pl.when(k == 0)
        def _init_and_umap():
            gram_acc[...] = jnp.zeros_like(gram_acc)

            # ---------------- UMAP (local) cross-entropy loss ----------------
            # Computed at step 0 (these inputs have constant index maps and are
            # resident from the start) so the VPU/EUP work co-issues under the
            # first feature tile's DMA + MXU instead of lengthening the epilogue.
            # (D, B) layout: batch on lanes, D on sublanes -> cheap sublane reduce.
            to_T = emb_toT_ref[...].astype(f32)
            from_T = emb_fromT_ref[...].astype(f32)

            def attraction(d2):
                # -log(clip(1/(1+a*d^2b), eps, 1)) == min(log(1+a*(d^2)^b), -log(eps))
                t = log_a + b * jnp.log(jnp.maximum(d2, 1e-30))
                return jnp.minimum(jnp.log(1.0 + jnp.exp(t)), clip_hi)

            def repellant(d2):
                # -log(clip(1-1/(1+a*d^2b), eps, 1)) == min(log(1+1/(a*(d^2)^b)), -log(eps))
                t = log_a + b * jnp.log(jnp.maximum(d2, 1e-30))
                return jnp.minimum(jnp.log(1.0 + jnp.exp(-t)), clip_hi)

            dpos = to_T - from_T
            d2_pos = jnp.sum(dpos * dpos, axis=0, keepdims=True)          # (1, B)
            ce_sum = jnp.sum(attraction(d2_pos))
            for s in range(nsr):                                          # static unroll
                dneg = to_T - negT_ref[s].astype(f32)                     # (D, B)
                d2_neg = jnp.sum(dneg * dneg, axis=0, keepdims=True)      # (1, B)
                ce_sum = ce_sum + rep * jnp.sum(repellant(d2_neg))
            ce_acc[0] = ce_sum * inv_n_pairs

        # ---- streamed high-dim Gram over the feature axis (bf16 MXU, f32 acc) ----
        xb = high_ref[...]                                                # (B, TF) bf16
        gram_acc[...] += lax.dot_general(
            xb, xb, dimension_numbers=(((1,), (1,)), ((), ())),
            preferred_element_type=f32)

        @pl.when(k == nk - 1)
        def _finalize():
            B = gram_acc.shape[0]
            umap_ref[0, 0] = ce_acc[0]

            # ------------- Global (Pearson-of-distances) loss ----------------
            gram = gram_acc[...]                                          # (B, B) f32
            rows = lax.broadcasted_iota(jnp.int32, (B, B), 0)
            cols = lax.broadcasted_iota(jnp.int32, (B, B), 1)
            eye = (rows == cols).astype(f32)

            # diag(X X^T) == accumulated row norms: take both orientations
            # from the Gram diagonal (no per-tile norm accumulation needed).
            gd = gram * eye
            sq_row = jnp.sum(gd, axis=0, keepdims=True)                   # (1, B)
            sq_col = jnp.sum(gd, axis=1, keepdims=True)                   # (B, 1)
            high_dis = jnp.sqrt(jnp.maximum(sq_col + sq_row - 2.0 * gram, 0.0))

            # Low-D Gram straight from the transposed embedding (contract dim 0).
            eT = emb_toT_ref[...].astype(f32)                             # (D, B)
            gl = lax.dot_general(eT, eT,
                                 dimension_numbers=(((0,), (0,)), ((), ())),
                                 preferred_element_type=f32)              # (B, B)
            sql_row = jnp.sum(eT * eT, axis=0, keepdims=True)             # (1, B)
            sql_col = jnp.sum(gl * eye, axis=1, keepdims=True)            # (B, 1)
            low_dis = jnp.sqrt(jnp.maximum(sql_col + sql_row - 2.0 * gl, 0.0))

            # Single-pass row-wise Pearson: only the two distance matrices are
            # live; no centered (B,B) temporaries are materialized.
            sh = jnp.sum(high_dis, axis=1, keepdims=True)                 # (B, 1)
            sl = jnp.sum(low_dis, axis=1, keepdims=True)
            shh = jnp.sum(high_dis * high_dis, axis=1, keepdims=True)
            sll = jnp.sum(low_dis * low_dis, axis=1, keepdims=True)
            shl = jnp.sum(high_dis * low_dis, axis=1, keepdims=True)
            num = shl - sh * sl * inv_batch
            varh = shh - sh * sh * inv_batch
            varl = sll - sl * sl * inv_batch
            den = jnp.sqrt(jnp.maximum(varh * varl, 0.0))
            # eps guard: zero-variance rows must not NaN the whole loss.
            r = num / jnp.maximum(den, 1e-12)
            global_ref[0, 0] = -jnp.sum(r) * inv_batch

    return kernel


def umap_global_loss(embed_to_from, placeholder, key, *,
                     negative_sample_rate, _a, _b, repulsion_strength,
                     global_loss, total_steps, batch_count,
                     feature_tile=None):
    """Forward of UMAPGlobalLoss for one step (batch_count is the step index)."""
    emb = embed_to_from.astype(jnp.float32)
    B, two_d = emb.shape
    D = two_d // 2
    nsr = int(negative_sample_rate)

    # torch.chunk(embed_to_from, 2, dim=1); transposed (D, B) copies so the
    # batch sits on the 128-lane axis inside the kernel.
    emb_to = emb[:, :D]                        # (B, D)
    emb_from = emb[:, D:]                      # (B, D)
    emb_to_T = emb_to.T                        # (D, B)
    emb_from_T = emb_from.T                    # (D, B)

    # torch: repeat_interleave + randperm.  Only the permuted "from" side
    # needs a gather; the nsr-fold repeat of embedding_to is reproduced
    # in-kernel by broadcasting, so no duplicated "to" array ever hits HBM.
    perm = jax.random.permutation(key, B * nsr)
    from_idx = (perm // nsr).reshape(B, nsr)
    neg_from_T = jnp.transpose(emb_from[from_idx], (1, 2, 0))  # (nsr, D, B)

    # torch.flatten(to_x, start_dim=1); bf16 halves HBM->VMEM traffic and
    # feeds the MXU's native bf16 path (f32 accumulation in the kernel).
    high = placeholder.reshape(B, -1).astype(jnp.bfloat16)
    F = high.shape[1]

    # ---- generation-aware VMEM budget and feature-tile selection ----
    try:
        vmem_cap = int(pltpu.get_tpu_info().vmem_capacity_bytes)
    except Exception:                          # non-TPU / old-API fallback
        vmem_cap = 64 * 1024 * 1024
    vmem_budget = int(vmem_cap * 0.80)         # leave compiler headroom

    # VMEM not available to the streamed feature tile: Gram accumulator,
    # finalize (B,B) temporaries, small resident low-D inputs.
    resident = 4 * B * B                       # gram accumulator (f32)
    resident += 6 * 4 * B * B                  # finalize distance temporaries
    resident += (2 + nsr) * D * B * 4 * 2      # low-D inputs (double-buffered)
    if feature_tile is None:
        avail = max(vmem_budget - resident, 2 * B * 128 * 2)
        feature_tile = (avail // (2 * B * 2)) // 128 * 128   # dbl-buffered bf16 tiles
        feature_tile = int(min(max(feature_tile, 128), 32768))

    if F <= feature_tile:
        TF, F_pad = F, F                       # single full-extent block, no pad
    else:
        f_units = -(-F // 128)                 # cdiv(F, 128)
        t_units = max(1, feature_tile // 128)
        nt = -(-f_units // t_units)            # number of feature tiles
        TF = (-(-f_units // nt)) * 128         # 128-aligned tile; waste < nt*128 lanes
        F_pad = nt * TF
    if F_pad != F:
        # zero-padded features contribute nothing to the Gram -> exact.
        high = jnp.pad(high, ((0, 0), (0, F_pad - F)))
    nk = F_pad // TF

    kernel = _make_kernel(a=_a, b=_b, repulsion_strength=repulsion_strength,
                          eps=1e-4, nsr=nsr, batch=B)

    umap_l, global_l = pl.pallas_call(
        kernel,
        out_shape=(jax.ShapeDtypeStruct((1, 1), jnp.float32),
                   jax.ShapeDtypeStruct((1, 1), jnp.float32)),
        grid_spec=pltpu.PrefetchScalarGridSpec(
            num_scalar_prefetch=0,
            grid=(nk,),
            in_specs=[
                pl.BlockSpec((D, B), lambda k: (0, 0)),            # emb_to^T
                pl.BlockSpec((D, B), lambda k: (0, 0)),            # emb_from^T
                pl.BlockSpec((nsr, D, B), lambda k: (0, 0, 0)),    # negatives^T
                # add pipeline_mode=pl.Buffered(3) here only if a profile shows
                # exposed DMA in the small-B (mem-bound) regime.
                pl.BlockSpec((B, TF), lambda k: (0, k)),           # high-dim feature tile
            ],
            out_specs=(
                pl.BlockSpec((1, 1), lambda k: (0, 0),
                             memory_space=pltpu.MemorySpace.SMEM),
                pl.BlockSpec((1, 1), lambda k: (0, 0),
                             memory_space=pltpu.MemorySpace.SMEM),
            ),
            scratch_shapes=[
                pltpu.VMEM((B, B), jnp.float32),   # high-dim Gram accumulator
                pltpu.SMEM((1,), jnp.float32),     # staged UMAP CE (written at k==0)
            ],
        ),
        compiler_params=pltpu.CompilerParams(
            dimension_semantics=("arbitrary",),     # F axis is a reduction
            vmem_limit_bytes=int(vmem_budget)),
    )(emb_to_T, emb_from_T, neg_from_T, high)

    umap_l = umap_l[0, 0]
    global_l = global_l[0, 0]

    # alpha/beta schedule (Python-side step state, matches the torch module).
    warmup = int(0.05 * total_steps)
    if batch_count >= warmup:
        if batch_count <= 0.9 * total_steps:
            beta = max(0.0, global_loss *
                       (1.0 - batch_count / (total_steps - warmup * 4)) ** 2)
        else:
            beta = 0.0
        alpha = max(0.0, 1.0 - beta)
    else:
        alpha = 0.0
        beta = global_loss

    return alpha * umap_l + beta * global_l


if __name__ == "__main__":
    key = jax.random.PRNGKey(0)
    k_emb, k_x, k_perm = jax.random.split(key, 3)

    B = 8                 # batch_size
    D = 8                 # UMAP embedding dim
    nsr = 4               # negative_sample_rate
    _a, _b = 1.576943, 0.8950608   # typical fitted UMAP a, b (deterministic)

    embed_to_from = jax.random.normal(k_emb, (B, 2 * D), dtype=jnp.float32)
    placeholder = jax.random.normal(k_x, (B, 2, 4, 4), dtype=jnp.float32)  # NCHW

    loss = umap_global_loss(
        embed_to_from, placeholder, k_perm,
        negative_sample_rate=nsr, _a=_a, _b=_b, repulsion_strength=1.0,
        global_loss=0.5, total_steps=1000, batch_count=100)

    loss = jax.block_until_ready(loss)
    assert jnp.isfinite(loss), f"non-finite loss: {loss}"
    print("KERNEL_OK")
</pallas_src>

<mosaic_0001>
module attributes {stable_mosaic.version = 11 : i64} {
  func.func @kernel(%arg0: i32, %arg1: memref<8x8xf32, #tpu.memory_space<vmem>>, %arg2: memref<8x8xf32, #tpu.memory_space<vmem>>, %arg3: memref<4x8x8xf32, #tpu.memory_space<vmem>>, %arg4: memref<8x32xbf16, #tpu.memory_space<vmem>>, %arg5: memref<1x1xf32, #tpu.memory_space<smem>>, %arg6: memref<1x1xf32, #tpu.memory_space<smem>>, %arg7: memref<8x8xf32, #tpu.memory_space<vmem>>, %arg8: memref<1xf32, #tpu.memory_space<smem>>) attributes {dimension_semantics = [#tpu.dimension_semantics<arbitrary>], iteration_bounds = array<i64: 1>, scalar_prefetch = 0 : i64, scratch_operands = 2 : i64, tpu.core_type = #tpu.core_type<tc>, window_params = [{pipeline_mode = #tpu.pipeline_mode<synchronous>, transform_indices = @transform_0, window_bounds = array<i64: 8, 8>}, {pipeline_mode = #tpu.pipeline_mode<synchronous>, transform_indices = @transform_1, window_bounds = array<i64: 8, 8>}, {pipeline_mode = #tpu.pipeline_mode<synchronous>, transform_indices = @transform_2, window_bounds = array<i64: 4, 8, 8>}, {transform_indices = @transform_3, window_bounds = array<i64: 8, 32>}, {transform_indices = @transform_4, window_bounds = array<i64: 1, 1>}, {transform_indices = @transform_5, window_bounds = array<i64: 1, 1>}]} {
    %c0_i32 = arith.constant 0 : i32
    %0 = arith.cmpi eq, %arg0, %c0_i32 : i32
    %1 = arith.extui %0 : i1 to i32
    %c0_i32_0 = arith.constant 0 : i32
    %2 = arith.cmpi ne, %1, %c0_i32_0 : i32
    scf.if %2 {
      %cst_8 = arith.constant 0.000000e+00 : f32
      %11 = vector.broadcast %cst_8 : f32 to vector<8x8xf32>
      %c0_9 = arith.constant 0 : index
      %c0_10 = arith.constant 0 : index
      %12 = vector.load %arg7[%c0_9, %c0_10] : memref<8x8xf32, #tpu.memory_space<vmem>>, vector<8x8xf32>
      tpu.vector_store %arg7[%c0_9, %c0_10], %11 {strides = array<i32>} : memref<8x8xf32, #tpu.memory_space<vmem>>, vector<8x8xf32>,
      %c0_11 = arith.constant 0 : index
      %c0_12 = arith.constant 0 : index
      %13 = vector.load %arg1[%c0_11, %c0_12] : memref<8x8xf32, #tpu.memory_space<vmem>>, vector<8x8xf32>
      %c0_13 = arith.constant 0 : index
      %c0_14 = arith.constant 0 : index
      %14 = vector.load %arg2[%c0_13, %c0_14] : memref<8x8xf32, #tpu.memory_space<vmem>>, vector<8x8xf32>
      %15 = arith.subf %13, %14 : vector<8x8xf32>
      %16 = arith.mulf %15, %15 : vector<8x8xf32>
      %cst_15 = arith.constant dense<0.000000e+00> : vector<8xf32>
      %17 = vector.multi_reduction <add>, %16, %cst_15 [0] : vector<8x8xf32> to vector<8xf32>
      %18 = vector.shape_cast %17 : vector<8xf32> to vector<1x8xf32>
      %cst_16 = arith.constant 1.000000e-30 : f32
      %19 = vector.broadcast %cst_16 : f32 to vector<1x8xf32>
      %20 = arith.maximumf %18, %19 : vector<1x8xf32>
      %21 = math.log %20 : vector<1x8xf32>
      %cst_17 = arith.constant 0.895060778 : f32
      %22 = vector.broadcast %cst_17 : f32 to vector<1x8xf32>
      %23 = arith.mulf %22, %21 : vector<1x8xf32>
      %cst_18 = arith.constant 0.455488175 : f32
      %24 = vector.broadcast %cst_18 : f32 to vector<1x8xf32>
      %25 = arith.addf %24, %23 : vector<1x8xf32>
      %26 = math.exp %25 : vector<1x8xf32>
      %cst_19 = arith.constant 1.000000e+00 : f32
      %27 = vector.broadcast %cst_19 : f32 to vector<1x8xf32>
      %28 = arith.addf %27, %26 : vector<1x8xf32>
      %29 = math.log %28 : vector<1x8xf32>
      %cst_20 = arith.constant 9.21034049 : f32
      %30 = vector.broadcast %cst_20 : f32 to vector<1x8xf32>
      %31 = arith.minimumf %29, %30 : vector<1x8xf32>
      %32 = vector.shape_cast %31 : vector<1x8xf32> to vector<1x1x8xf32>
      %cst_21 = arith.constant dense<0.000000e+00> : vector<1xf32>
      %33 = vector.multi_reduction <add>, %32, %cst_21 [1, 2] : vector<1x1x8xf32> to vector<1xf32>
      %34 = vector.shape_cast %33 : vector<1xf32> to vector<1x1x1xf32>
      %35 = vector.extract %34[0, 0, 0] : f32 from vector<1x1x1xf32>
      %c0_22 = arith.constant 0 : index
      %c0_23 = arith.constant 0 : index
      %c0_24 = arith.constant 0 : index
      %36 = vector.load %arg3[%c0_22, %c0_23, %c0_24] : memref<4x8x8xf32, #tpu.memory_space<vmem>>, vector<1x8x8xf32>
      %37 = vector.shape_cast %36 : vector<1x8x8xf32> to vector<8x8xf32>
      %38 = arith.subf %13, %37 : vector<8x8xf32>
      %39 = arith.mulf %38, %38 : vector<8x8xf32>
      %cst_25 = arith.constant dense<0.000000e+00> : vector<8xf32>
      %40 = vector.multi_reduction <add>, %39, %cst_25 [0] : vector<8x8xf32> to vector<8xf32>
      %41 = vector.shape_cast %40 : vector<8xf32> to vector<1x8xf32>
      %cst_26 = arith.constant 1.000000e-30 : f32
      %42 = vector.broadcast %cst_26 : f32 to vector<1x8xf32>
      %43 = arith.maximumf %41, %42 : vector<1x8xf32>
      %44 = math.log %43 : vector<1x8xf32>
      %cst_27 = arith.constant 0.895060778 : f32
      %45 = vector.broadcast %cst_27 : f32 to vector<1x8xf32>
      %46 = arith.mulf %45, %44 : vector<1x8xf32>
      %cst_28 = arith.constant 0.455488175 : f32
      %47 = vector.broadcast %cst_28 : f32 to vector<1x8xf32>
      %48 = arith.addf %47, %46 : vector<1x8xf32>
      %cst_29 = arith.constant 0.000000e+00 : f32
      %49 = vector.broadcast %cst_29 : f32 to vector<1x8xf32>
      %50 = arith.subf %49, %48 : vector<1x8xf32>
      %51 = math.exp %50 : vector<1x8xf32>
      %cst_30 = arith.constant 1.000000e+00 : f32
      %52 = vector.broadcast %cst_30 : f32 to vector<1x8xf32>
      %53 = arith.addf %52, %51 : vector<1x8xf32>
      %54 = math.log %53 : vector<1x8xf32>
      %cst_31 = arith.constant 9.21034049 : f32
      %55 = vector.broadcast %cst_31 : f32 to vector<1x8xf32>
      %56 = arith.minimumf %54, %55 : vector<1x8xf32>
      %57 = vector.shape_cast %56 : vector<1x8xf32> to vector<1x1x8xf32>
      %cst_32 = arith.constant dense<0.000000e+00> : vector<1xf32>
      %58 = vector.multi_reduction <add>, %57, %cst_32 [1, 2] : vector<1x1x8xf32> to vector<1xf32>
      %59 = vector.shape_cast %58 : vector<1xf32> to vector<1x1x1xf32>
      %60 = vector.extract %59[0, 0, 0] : f32 from vector<1x1x1xf32>
      %cst_33 = arith.constant 1.000000e+00 : f32
      %61 = arith.mulf %cst_33, %60 : f32
      %62 = arith.addf %35, %61 : f32
      %c1 = arith.constant 1 : index
      %c0_34 = arith.constant 0 : index
      %c0_35 = arith.constant 0 : index
      %63 = vector.load %arg3[%c1, %c0_34, %c0_35] : memref<4x8x8xf32, #tpu.memory_space<vmem>>, vector<1x8x8xf32>
      %64 = vector.shape_cast %63 : vector<1x8x8xf32> to vector<8x8xf32>
      %65 = arith.subf %13, %64 : vector<8x8xf32>
      %66 = arith.mulf %65, %65 : vector<8x8xf32>
      %cst_36 = arith.constant dense<0.000000e+00> : vector<8xf32>
      %67 = vector.multi_reduction <add>, %66, %cst_36 [0] : vector<8x8xf32> to vector<8xf32>
      %68 = vector.shape_cast %67 : vector<8xf32> to vector<1x8xf32>
      %cst_37 = arith.constant 1.000000e-30 : f32
      %69 = vector.broadcast %cst_37 : f32 to vector<1x8xf32>
      %70 = arith.maximumf %68, %69 : vector<1x8xf32>
      %71 = math.log %70 : vector<1x8xf32>
      %cst_38 = arith.constant 0.895060778 : f32
      %72 = vector.broadcast %cst_38 : f32 to vector<1x8xf32>
      %73 = arith.mulf %72, %71 : vector<1x8xf32>
      %cst_39 = arith.constant 0.455488175 : f32
      %74 = vector.broadcast %cst_39 : f32 to vector<1x8xf32>
      %75 = arith.addf %74, %73 : vector<1x8xf32>
      %cst_40 = arith.constant 0.000000e+00 : f32
      %76 = vector.broadcast %cst_40 : f32 to vector<1x8xf32>
      %77 = arith.subf %76, %75 : vector<1x8xf32>
      %78 = math.exp %77 : vector<1x8xf32>
      %cst_41 = arith.constant 1.000000e+00 : f32
      %79 = vector.broadcast %cst_41 : f32 to vector<1x8xf32>
      %80 = arith.addf %79, %78 : vector<1x8xf32>
      %81 = math.log %80 : vector<1x8xf32>
      %cst_42 = arith.constant 9.21034049 : f32
      %82 = vector.broadcast %cst_42 : f32 to vector<1x8xf32>
      %83 = arith.minimumf %81, %82 : vector<1x8xf32>
      %84 = vector.shape_cast %83 : vector<1x8xf32> to vector<1x1x8xf32>
      %cst_43 = arith.constant dense<0.000000e+00> : vector<1xf32>
      %85 = vector.multi_reduction <add>, %84, %cst_43 [1, 2] : vector<1x1x8xf32> to vector<1xf32>
      %86 = vector.shape_cast %85 : vector<1xf32> to vector<1x1x1xf32>
      %87 = vector.extract %86[0, 0, 0] : f32 from vector<1x1x1xf32>
      %cst_44 = arith.constant 1.000000e+00 : f32
      %88 = arith.mulf %cst_44, %87 : f32
      %89 = arith.addf %62, %88 : f32
      %c2 = arith.constant 2 : index
      %c0_45 = arith.constant 0 : index
      %c0_46 = arith.constant 0 : index
      %90 = vector.load %arg3[%c2, %c0_45, %c0_46] : memref<4x8x8xf32, #tpu.memory_space<vmem>>, vector<1x8x8xf32>
      %91 = vector.shape_cast %90 : vector<1x8x8xf32> to vector<8x8xf32>
      %92 = arith.subf %13, %91 : vector<8x8xf32>
      %93 = arith.mulf %92, %92 : vector<8x8xf32>
      %cst_47 = arith.constant dense<0.000000e+00> : vector<8xf32>
      %94 = vector.multi_reduction <add>, %93, %cst_47 [0] : vector<8x8xf32> to vector<8xf32>
      %95 = vector.shape_cast %94 : vector<8xf32> to vector<1x8xf32>
      %cst_48 = arith.constant 1.000000e-30 : f32
      %96 = vector.broadcast %cst_48 : f32 to vector<1x8xf32>
      %97 = arith.maximumf %95, %96 : vector<1x8xf32>
      %98 = math.log %97 : vector<1x8xf32>
      %cst_49 = arith.constant 0.895060778 : f32
      %99 = vector.broadcast %cst_49 : f32 to vector<1x8xf32>
      %100 = arith.mulf %99, %98 : vector<1x8xf32>
      %cst_50 = arith.constant 0.455488175 : f32
      %101 = vector.broadcast %cst_50 : f32 to vector<1x8xf32>
      %102 = arith.addf %101, %100 : vector<1x8xf32>
      %cst_51 = arith.constant 0.000000e+00 : f32
      %103 = vector.broadcast %cst_51 : f32 to vector<1x8xf32>
      %104 = arith.subf %103, %102 : vector<1x8xf32>
      %105 = math.exp %104 : vector<1x8xf32>
      %cst_52 = arith.constant 1.000000e+00 : f32
      %106 = vector.broadcast %cst_52 : f32 to vector<1x8xf32>
      %107 = arith.addf %106, %105 : vector<1x8xf32>
      %108 = math.log %107 : vector<1x8xf32>
      %cst_53 = arith.constant 9.21034049 : f32
      %109 = vector.broadcast %cst_53 : f32 to vector<1x8xf32>
      %110 = arith.minimumf %108, %109 : vector<1x8xf32>
      %111 = vector.shape_cast %110 : vector<1x8xf32> to vector<1x1x8xf32>
      %cst_54 = arith.constant dense<0.000000e+00> : vector<1xf32>
      %112 = vector.multi_reduction <add>, %111, %cst_54 [1, 2] : vector<1x1x8xf32> to vector<1xf32>
      %113 = vector.shape_cast %112 : vector<1xf32> to vector<1x1x1xf32>
      %114 = vector.extract %113[0, 0, 0] : f32 from vector<1x1x1xf32>
      %cst_55 = arith.constant 1.000000e+00 : f32
      %115 = arith.mulf %cst_55, %114 : f32
      %116 = arith.addf %89, %115 : f32
      %c3 = arith.constant 3 : index
      %c0_56 = arith.constant 0 : index
      %c0_57 = arith.constant 0 : index
      %117 = vector.load %arg3[%c3, %c0_56, %c0_57] : memref<4x8x8xf32, #tpu.memory_space<vmem>>, vector<1x8x8xf32>
      %118 = vector.shape_cast %117 : vector<1x8x8xf32> to vector<8x8xf32>
      %119 = arith.subf %13, %118 : vector<8x8xf32>
      %120 = arith.mulf %119, %119 : vector<8x8xf32>
      %cst_58 = arith.constant dense<0.000000e+00> : vector<8xf32>
      %121 = vector.multi_reduction <add>, %120, %cst_58 [0] : vector<8x8xf32> to vector<8xf32>
      %122 = vector.shape_cast %121 : vector<8xf32> to vector<1x8xf32>
      %cst_59 = arith.constant 1.000000e-30 : f32
      %123 = vector.broadcast %cst_59 : f32 to vector<1x8xf32>
      %124 = arith.maximumf %122, %123 : vector<1x8xf32>
      %125 = math.log %124 : vector<1x8xf32>
      %cst_60 = arith.constant 0.895060778 : f32
      %126 = vector.broadcast %cst_60 : f32 to vector<1x8xf32>
      %127 = arith.mulf %126, %125 : vector<1x8xf32>
      %cst_61 = arith.constant 0.455488175 : f32
      %128 = vector.broadcast %cst_61 : f32 to vector<1x8xf32>
      %129 = arith.addf %128, %127 : vector<1x8xf32>
      %cst_62 = arith.constant 0.000000e+00 : f32
      %130 = vector.broadcast %cst_62 : f32 to vector<1x8xf32>
      %131 = arith.subf %130, %129 : vector<1x8xf32>
      %132 = math.exp %131 : vector<1x8xf32>
      %cst_63 = arith.constant 1.000000e+00 : f32
      %133 = vector.broadcast %cst_63 : f32 to vector<1x8xf32>
      %134 = arith.addf %133, %132 : vector<1x8xf32>
      %135 = math.log %134 : vector<1x8xf32>
      %cst_64 = arith.constant 9.21034049 : f32
      %136 = vector.broadcast %cst_64 : f32 to vector<1x8xf32>
      %137 = arith.minimumf %135, %136 : vector<1x8xf32>
      %138 = vector.shape_cast %137 : vector<1x8xf32> to vector<1x1x8xf32>
      %cst_65 = arith.constant dense<0.000000e+00> : vector<1xf32>
      %139 = vector.multi_reduction <add>, %138, %cst_65 [1, 2] : vector<1x1x8xf32> to vector<1xf32>
      %140 = vector.shape_cast %139 : vector<1xf32> to vector<1x1x1xf32>
      %141 = vector.extract %140[0, 0, 0] : f32 from vector<1x1x1xf32>
      %cst_66 = arith.constant 1.000000e+00 : f32
      %142 = arith.mulf %cst_66, %141 : f32
      %143 = arith.addf %116, %142 : f32
      %cst_67 = arith.constant 2.500000e-02 : f32
      %144 = arith.mulf %143, %cst_67 : f32
      %c0_68 = arith.constant 0 : index
      %145 = memref.load %arg8[%c0_68] : memref<1xf32, #tpu.memory_space<smem>>
      memref.store %144, %arg8[%c0_68] : memref<1xf32, #tpu.memory_space<smem>>
    } else {
    }
    %c0 = arith.constant 0 : index
    %c0_1 = arith.constant 0 : index
    %3 = vector.load %arg4[%c0, %c0_1] : memref<8x32xbf16, #tpu.memory_space<vmem>>, vector<8x32xbf16>
    %c0_2 = arith.constant 0 : index
    %c0_3 = arith.constant 0 : index
    %4 = vector.load %arg7[%c0_2, %c0_3] : memref<8x8xf32, #tpu.memory_space<vmem>>, vector<8x8xf32>
    %cst = arith.constant dense<0.000000e+00> : vector<8x8xf32>
    %5 = tpu.matmul %3, %3, %cst {dimension_numbers = #tpu.dot_dimension_numbers<[1], [1], [0], [0], [0, 0, 1, 0], [], []>} : vector<8x32xbf16>, vector<8x32xbf16>, vector<8x8xf32> -> vector<8x8xf32>
    %6 = arith.addf %4, %5 : vector<8x8xf32>
    %c0_4 = arith.constant 0 : index
    %c0_5 = arith.constant 0 : index
    %7 = vector.load %arg7[%c0_4, %c0_5] : memref<8x8xf32, #tpu.memory_space<vmem>>, vector<8x8xf32>
    tpu.vector_store %arg7[%c0_4, %c0_5], %6 {strides = array<i32>} : memref<8x8xf32, #tpu.memory_space<vmem>>, vector<8x8xf32>,
    %c0_i32_6 = arith.constant 0 : i32
    %8 = arith.cmpi eq, %arg0, %c0_i32_6 : i32
    %9 = arith.extui %8 : i1 to i32
    %c0_i32_7 = arith.constant 0 : i32
    %10 = arith.cmpi ne, %9, %c0_i32_7 : i32
    scf.if %10 {
      %c0_8 = arith.constant 0 : index
      %11 = memref.load %arg8[%c0_8] : memref<1xf32, #tpu.memory_space<smem>>
      %c0_9 = arith.constant 0 : index
      %c0_10 = arith.constant 0 : index
      %12 = memref.load %arg5[%c0_9, %c0_10] : memref<1x1xf32, #tpu.memory_space<smem>>
      memref.store %11, %arg5[%c0_9, %c0_10] : memref<1x1xf32, #tpu.memory_space<smem>>
      %c0_11 = arith.constant 0 : index
      %c0_12 = arith.constant 0 : index
      %13 = vector.load %arg7[%c0_11, %c0_12] : memref<8x8xf32, #tpu.memory_space<vmem>>, vector<8x8xf32>
      %14 = tpu.iota {dimensions = array<i32: 0>} : vector<8x8xi32>
      %15 = tpu.iota {dimensions = array<i32: 1>} : vector<8x8xi32>
      %16 = arith.cmpi eq, %14, %15 : vector<8x8xi32>
      %17 = arith.extui %16 : vector<8x8xi1> to vector<8x8xi32>
      %18 = arith.sitofp %17 : vector<8x8xi32> to vector<8x8xf32>
      %19 = arith.mulf %13, %18 : vector<8x8xf32>
      %cst_13 = arith.constant dense<0.000000e+00> : vector<8xf32>
      %20 = vector.multi_reduction <add>, %19, %cst_13 [0] : vector<8x8xf32> to vector<8xf32>
      %21 = vector.shape_cast %20 : vector<8xf32> to vector<1x8xf32>
      %cst_14 = arith.constant dense<0.000000e+00> : vector<8xf32>
      %22 = vector.multi_reduction <add>, %19, %cst_14 [1] : vector<8x8xf32> to vector<8xf32>
      %23 = vector.shape_cast %22 : vector<8xf32> to vector<8x1xf32>
      %24 = vector.broadcast %23 : vector<8x1xf32> to vector<8x8xf32>
      %25 = vector.broadcast %21 : vector<1x8xf32> to vector<8x8xf32>
      %26 = arith.addf %24, %25 : vector<8x8xf32>
      %cst_15 = arith.constant 2.000000e+00 : f32
      %27 = vector.broadcast %cst_15 : f32 to vector<8x8xf32>
      %28 = arith.mulf %27, %13 : vector<8x8xf32>
      %29 = arith.subf %26, %28 : vector<8x8xf32>
      %cst_16 = arith.constant 0.000000e+00 : f32
      %30 = vector.broadcast %cst_16 : f32 to vector<8x8xf32>
      %31 = arith.maximumf %29, %30 : vector<8x8xf32>
      %32 = math.sqrt %31 : vector<8x8xf32>
      %c0_17 = arith.constant 0 : index
      %c0_18 = arith.constant 0 : index
      %33 = vector.load %arg1[%c0_17, %c0_18] : memref<8x8xf32, #tpu.memory_space<vmem>>, vector<8x8xf32>
      %cst_19 = arith.constant dense<0.000000e+00> : vector<8x8xf32>
      %34 = tpu.matmul %33, %33, %cst_19 {dimension_numbers = #tpu.dot_dimension_numbers<[0], [0], [1], [1], [0, 1, 1, 1], [], []>} : vector<8x8xf32>, vector<8x8xf32>, vector<8x8xf32> -> vector<8x8xf32>
      %35 = arith.mulf %33, %33 : vector<8x8xf32>
      %cst_20 = arith.constant dense<0.000000e+00> : vector<8xf32>
      %36 = vector.multi_reduction <add>, %35, %cst_20 [0] : vector<8x8xf32> to vector<8xf32>
      %37 = vector.shape_cast %36 : vector<8xf32> to vector<1x8xf32>
      %38 = arith.mulf %34, %18 : vector<8x8xf32>
      %cst_21 = arith.constant dense<0.000000e+00> : vector<8xf32>
      %39 = vector.multi_reduction <add>, %38, %cst_21 [1] : vector<8x8xf32> to vector<8xf32>
      %40 = vector.shape_cast %39 : vector<8xf32> to vector<8x1xf32>
      %41 = vector.broadcast %40 : vector<8x1xf32> to vector<8x8xf32>
      %42 = vector.broadcast %37 : vector<1x8xf32> to vector<8x8xf32>
      %43 = arith.addf %41, %42 : vector<8x8xf32>
      %cst_22 = arith.constant 2.000000e+00 : f32
      %44 = vector.broadcast %cst_22 : f32 to vector<8x8xf32>
      %45 = arith.mulf %44, %34 : vector<8x8xf32>
      %46 = arith.subf %43, %45 : vector<8x8xf32>
      %cst_23 = arith.constant 0.000000e+00 : f32
      %47 = vector.broadcast %cst_23 : f32 to vector<8x8xf32>
      %48 = arith.maximumf %46, %47 : vector<8x8xf32>
      %49 = math.sqrt %48 : vector<8x8xf32>
      %cst_24 = arith.constant dense<0.000000e+00> : vector<8xf32>
      %50 = vector.multi_reduction <add>, %32, %cst_24 [1] : vector<8x8xf32> to vector<8xf32>
      %51 = vector.shape_cast %50 : vector<8xf32> to vector<8x1xf32>
      %cst_25 = arith.constant dense<0.000000e+00> : vector<8xf32>
      %52 = vector.multi_reduction <add>, %49, %cst_25 [1] : vector<8x8xf32> to vector<8xf32>
      %53 = vector.shape_cast %52 : vector<8xf32> to vector<8x1xf32>
      %54 = arith.mulf %32, %32 : vector<8x8xf32>
      %cst_26 = arith.constant dense<0.000000e+00> : vector<8xf32>
      %55 = vector.multi_reduction <add>, %54, %cst_26 [1] : vector<8x8xf32> to vector<8xf32>
      %56 = vector.shape_cast %55 : vector<8xf32> to vector<8x1xf32>
      %57 = arith.mulf %49, %49 : vector<8x8xf32>
      %cst_27 = arith.constant dense<0.000000e+00> : vector<8xf32>
      %58 = vector.multi_reduction <add>, %57, %cst_27 [1] : vector<8x8xf32> to vector<8xf32>
      %59 = vector.shape_cast %58 : vector<8xf32> to vector<8x1xf32>
      %60 = arith.mulf %32, %49 : vector<8x8xf32>
      %cst_28 = arith.constant dense<0.000000e+00> : vector<8xf32>
      %61 = vector.multi_reduction <add>, %60, %cst_28 [1] : vector<8x8xf32> to vector<8xf32>
      %62 = vector.shape_cast %61 : vector<8xf32> to vector<8x1xf32>
      %63 = arith.mulf %51, %53 : vector<8x1xf32>
      %cst_29 = arith.constant 1.250000e-01 : f32
      %64 = vector.broadcast %cst_29 : f32 to vector<8x1xf32>
      %65 = arith.mulf %63, %64 : vector<8x1xf32>
      %66 = arith.subf %62, %65 : vector<8x1xf32>
      %67 = arith.mulf %51, %51 : vector<8x1xf32>
      %cst_30 = arith.constant 1.250000e-01 : f32
      %68 = vector.broadcast %cst_30 : f32 to vector<8x1xf32>
      %69 = arith.mulf %67, %68 : vector<8x1xf32>
      %70 = arith.subf %56, %69 : vector<8x1xf32>
      %71 = arith.mulf %53, %53 : vector<8x1xf32>
      %cst_31 = arith.constant 1.250000e-01 : f32
      %72 = vector.broadcast %cst_31 : f32 to vector<8x1xf32>
      %73 = arith.mulf %71, %72 : vector<8x1xf32>
      %74 = arith.subf %59, %73 : vector<8x1xf32>
      %75 = arith.mulf %70, %74 : vector<8x1xf32>
      %cst_32 = arith.constant 0.000000e+00 : f32
      %76 = vector.broadcast %cst_32 : f32 to vector<8x1xf32>
      %77 = arith.maximumf %75, %76 : vector<8x1xf32>
      %78 = math.sqrt %77 : vector<8x1xf32>
      %cst_33 = arith.constant 9.99999996E-13 : f32
      %79 = vector.broadcast %cst_33 : f32 to vector<8x1xf32>
      %80 = arith.maximumf %78, %79 : vector<8x1xf32>
      %81 = arith.divf %66, %80 : vector<8x1xf32>
      %82 = vector.shape_cast %81 : vector<8x1xf32> to vector<1x8x1xf32>
      %cst_34 = arith.constant dense<0.000000e+00> : vector<1xf32>
      %83 = vector.multi_reduction <add>, %82, %cst_34 [1, 2] : vector<1x8x1xf32> to vector<1xf32>
      %84 = vector.shape_cast %83 : vector<1xf32> to vector<1x1x1xf32>
      %85 = vector.extract %84[0, 0, 0] : f32 from vector<1x1x1xf32>
      %cst_35 = arith.constant 0.000000e+00 : f32
      %86 = arith.subf %cst_35, %85 : f32
      %cst_36 = arith.constant 1.250000e-01 : f32
      %87 = arith.mulf %86, %cst_36 : f32
      %c0_37 = arith.constant 0 : index
      %c0_38 = arith.constant 0 : index
      %88 = memref.load %arg6[%c0_37, %c0_38] : memref<1x1xf32, #tpu.memory_space<smem>>
      memref.store %87, %arg6[%c0_37, %c0_38] : memref<1x1xf32, #tpu.memory_space<smem>>
    } else {
    }
    return
  }
  func.func @transform_0(%arg0: i32) -> (i32, i32) {
    %c0_i32 = arith.constant 0 : i32
    %c0_i32_0 = arith.constant 0 : i32
    %c0_i32_1 = arith.constant 0 : i32
    return %c0_i32, %c0_i32_0 : i32, i32
  }
  func.func @transform_1(%arg0: i32) -> (i32, i32) {
    %c0_i32 = arith.constant 0 : i32
    %c0_i32_0 = arith.constant 0 : i32
    %c0_i32_1 = arith.constant 0 : i32
    return %c0_i32, %c0_i32_0 : i32, i32
  }
  func.func @transform_2(%arg0: i32) -> (i32, i32, i32) {
    %c0_i32 = arith.constant 0 : i32
    %c0_i32_0 = arith.constant 0 : i32
    %c0_i32_1 = arith.constant 0 : i32
    %c0_i32_2 = arith.constant 0 : i32
    return %c0_i32, %c0_i32_0, %c0_i32_1 : i32, i32, i32
  }
  func.func @transform_3(%arg0: i32) -> (i32, i32) {
    %c0_i32 = arith.constant 0 : i32
    %c0_i32_0 = arith.constant 0 : i32
    return %c0_i32, %arg0 : i32, i32
  }
  func.func @transform_4(%arg0: i32) -> (i32, i32) {
    %c0_i32 = arith.constant 0 : i32
    %c0_i32_0 = arith.constant 0 : i32
    %c0_i32_1 = arith.constant 0 : i32
    return %c0_i32, %c0_i32_0 : i32, i32
  }
  func.func @transform_5(%arg0: i32) -> (i32, i32) {
    %c0_i32 = arith.constant 0 : i32
    %c0_i32_0 = arith.constant 0 : i32
    %c0_i32_1 = arith.constant 0 : i32
    return %c0_i32, %c0_i32_0 : i32, i32
  }
}

</mosaic_0001>

<llo_original>
// kernel: tpu_custom_call.1
$region0: #{tpu_custom_call.1}
  #allocation0 [shape = 'u32[]', space=smem, size = 0x4, offset = 0x4, fixed_abs, tag = 'smem constant byte address 0x4 - core index']
  #allocation1 [shape = 'u32[144,128]{1,0:T(1,128)}', space=vmem, size = 0x12000, scoped, tag = 'internal scratch']
  #allocation2 [shape = 'f32[8,8]{1,0:T(8,128)}', space=vmem, size = 0x1000, scoped, tag = 'scratch operand']
  #allocation3 [shape = 'f32[1]{0:T(128)}', space=smem, size = 0x200, scoped, tag = 'scratch operand']
  %s0 = inlined_call_operand.hbm [shape: f32[8,8], index: 0, kind: input, shape index: {}]
  %s1 = inlined_call_operand.hbm [shape: f32[8,8], index: 1, kind: input, shape index: {}]
  %s2 = inlined_call_operand.hbm [shape: f32[4,8,8], index: 2, kind: input, shape index: {}]
  %s3 = inlined_call_operand.vmem [shape: bf16[8,32], index: 3, kind: input, shape index: {}]
  %s4 = inlined_call_operand.hbm [shape: f32[1,1], index: 4, kind: output, shape index: {0}]
  %s5 = inlined_call_operand.hbm [shape: f32[1,1], index: 5, kind: output, shape index: {1}]
  %6 = xla_tuple %s4, %s5
  %s7 = sld [smem:[#allocation0]]
  $region54: #{tpu_custom_call.1} parent=0
    _
  %s9 = ssub.s32 1, %s7
  %s10 = scalar_select 0, %s9, %s7
  $region1: #{tpu_custom_call.1} parent=0
    #allocation4 [shape = 'u8[4096]{0}', space=vmem, size = 0x1000, scoped, tag = 'input window, operand 0, single buffered']
    #allocation5 [shape = 's32[1]{0}', space=sflag, size = 0x4, scoped, tag = 'scoped memory for tpu_custom_call.1']
    #allocation6 [shape = 's32[1]{0}', space=sflag, size = 0x4, scoped, tag = 'scoped memory for tpu_custom_call.1']
    #allocation7 [shape = 'u8[4096]{0}', space=vmem, size = 0x1000, scoped, tag = 'input window, operand 1, single buffered']
    #allocation8 [shape = 's32[1]{0}', space=sflag, size = 0x4, scoped, tag = 'scoped memory for tpu_custom_call.1']
    #allocation9 [shape = 'u8[16384]{0}', space=vmem, size = 0x4000, scoped, tag = 'input window, operand 2, single buffered']
    #allocation10 [shape = 'u8[512]{0}', space=smem, size = 0x200, scoped, tag = 'output window, operand 0, single buffered']
    #allocation11 [shape = 'u8[512]{0}', space=smem, size = 0x200, scoped, tag = 'output window, operand 1, single buffered']
    #allocation12 [shape = 's32[1]{0}', space=sflag, size = 0x4, scoped, tag = 'scoped memory for tpu_custom_call.1']
    %11 = vsyncpa [#allocation5], 0
    %12 = vsyncpa [#allocation8], 0
    %13 = vsyncpa [#allocation6], 0
    %14 = vsyncpa [#allocation12], 0
    // Predicated region
    $region2: #{tpu_custom_call.1} parent=1 // pred_check
      _
    $region3: #{tpu_custom_call.1} parent=1 // pred_check_branch
      %16 = sbr.rel (0) target = $region5
    $region4: #{tpu_custom_call.1} parent=1 // pred_region
      %s18 = ssub.s32 128, 128
      %19 = vsyncadd [#allocation5], %s18
      %s21 = sshll.u32 [#allocation4], 4
      %s22 = int_to_ptr.vmem [resolvable:$true] %s21
      %24 = dma.hbm_to_vmem [thread:$0]  %s0, 128, %s22, [#allocation5]
    $region5: #{tpu_custom_call.1} parent=1 // pred_fallthru
      _
    // Predicated region
    $region6: #{tpu_custom_call.1} parent=1 // pred_check
      _
    $region7: #{tpu_custom_call.1} parent=1 // pred_check_branch
      %26 = sbr.rel (0) target = $region9
    $region8: #{tpu_custom_call.1} parent=1 // pred_region
      %s28 = ssub.s32 128, 128
      %29 = vsyncadd [#allocation8], %s28
      %s31 = sshll.u32 [#allocation7], 4
      %s32 = int_to_ptr.vmem [resolvable:$true] %s31
      %34 = dma.hbm_to_vmem [thread:$0]  %s1, 128, %s32, [#allocation8]
    $region9: #{tpu_custom_call.1} parent=1 // pred_fallthru
      _
    // Predicated region
    $region10: #{tpu_custom_call.1} parent=1 // pred_check
      _
    $region11: #{tpu_custom_call.1} parent=1 // pred_check_branch
      %36 = sbr.rel (0) target = $region13
    $region12: #{tpu_custom_call.1} parent=1 // pred_region
      %s38 = ssub.s32 512, 512
      %39 = vsyncadd [#allocation8], %s38
      %s40 = sshll.u32 [#allocation9], 4
      %s41 = int_to_ptr.vmem [resolvable:$true] %s40
      %46 = dma.hbm_to_vmem [thread:$0]  %s2, 512, %s41, [#allocation8], 128, 128, 8
    $region13: #{tpu_custom_call.1} parent=1 // pred_fallthru
      _
    // Predicated region
    $region14: #{tpu_custom_call.1} parent=1 // pred_check
      _
    $region15: #{tpu_custom_call.1} parent=1 // pred_check_branch
      %48 = sbr.rel (0) target = $region17
    $region16: #{tpu_custom_call.1} parent=1 // pred_region
      _
    $region17: #{tpu_custom_call.1} parent=1 // pred_fallthru
      _
    // Predicated region
    $region18: #{tpu_custom_call.1} parent=1 // pred_check
      _
    $region19: #{tpu_custom_call.1} parent=1 // pred_check_branch
      %50 = sbr.rel (0) target = $region21
    $region20: #{tpu_custom_call.1} parent=1 // pred_region
      %51 = dma.done [#allocation5], 128
    $region21: #{tpu_custom_call.1} parent=1 // pred_fallthru
      _
    // Predicated region
    $region22: #{tpu_custom_call.1} parent=1 // pred_check
      _
    $region23: #{tpu_custom_call.1} parent=1 // pred_check_branch
      %53 = sbr.rel (0) target = $region25
    $region24: #{tpu_custom_call.1} parent=1 // pred_region
      %54 = dma.done [#allocation8], 128
    $region25: #{tpu_custom_call.1} parent=1 // pred_fallthru
      _
    // Predicated region
    $region26: #{tpu_custom_call.1} parent=1 // pred_check
      _
    $region27: #{tpu_custom_call.1} parent=1 // pred_check_branch
      %56 = sbr.rel (0) target = $region29
    $region28: #{tpu_custom_call.1} parent=1 // pred_region
      %57 = dma.done [#allocation8], 512
    $region29: #{tpu_custom_call.1} parent=1 // pred_fallthru
      _
    %p59 = scmp.eq.s32.totalorder 0, 0
    // Predicated region
    $region30: #{tpu_custom_call.1} parent=1 // pred_check
      %p60 = pneg %p59
    $region31: #{tpu_custom_call.1} parent=1 // pred_check_branch
      %62 = sbr.rel (%p60) target = $region33
    $region32: #{tpu_custom_call.1} parent=1 // pred_region
      %vm63 = vcmask 64512
      %64 = vst.msk [vmem:[#allocation2] sm:$0xff] %vm63, 0.0
      %v65 = vld [vmem:[#allocation4] sm:$0xff]
      %v66 = vld [vmem:[#allocation7] sm:$0xff]
      %v67 = vsub.f32 %v65, %v66
      %v68 = vmul.f32 %v67, %v67
      %v69 = vsel %vm63, %v68, 0.0
      %v70 = vrot.slane %v69, 4
      %v71 = vadd.f32 %v69, %v70
      %v72 = vrot.slane %v71, 2
      %v73 = vadd.f32 %v71, %v72
      %v74 = vrot.slane %v73, 1
      %v75 = vadd.f32 %v73, %v74
      %v76 = vmax.f32 %v75, 1e-30
      %v77 = vlog2.pop %v76
      %v78 = vmul.f32 %v77, 0.6931472
      %v79 = vmul.f32 %v78, 0.8950608
      %v80 = vadd.f32 %v79, 0.45548818
      %v81 = vmul.f32 %v80, 1.442695
      %v82 = vpow.pop %v81
      %v83 = vadd.f32 %v82, 1.0
      %v84 = vlog2.pop %v83
      %v85 = vmul.f32 %v84, 0.6931472
      %v86 = vmin.f32 %v85, 9.2103405
      %vm87 = vcmask 57344
      %v88 = vsel %vm87, %v86, 0.0
      %89 = vadd.xlane.f32.xlu0 %v88
      %v90 = vpop.xlane.xlu0 %89
      %v91 = vrot.slane %v90, 4
      %v92 = vadd.f32 %v90, %v91
      %v93 = vrot.slane %v92, 2
      %v94 = vadd.f32 %v92, %v93
      %v95 = vrot.slane %v94, 1
      %v96 = vadd.f32 %v94, %v95
      %s97 = vtos %v96
      %v98 = vld [vmem:[#allocation9] sm:$0xff]
      %v99 = vsub.f32 %v65, %v98
      %v100 = vmul.f32 %v99, %v99
      %v101 = vsel %vm63, %v100, 0.0
      %v102 = vrot.slane %v101, 4
      %v103 = vadd.f32 %v101, %v102
      %v104 = vrot.slane %v103, 2
      %v105 = vadd.f32 %v103, %v104
      %v106 = vrot.slane %v105, 1
      %v107 = vadd.f32 %v105, %v106
      %v108 = vmax.f32 %v107, 1e-30
      %v109 = vlog2.pop %v108
      %v110 = vmul.f32 %v109, 0.6931472
      %v111 = vmul.f32 %v110, 0.8950608
      %v112 = vadd.f32 %v111, 0.45548818
      %v113 = vsub.f32 0.0, %v112
      %v114 = vmul.f32 %v113, 1.442695
      %v115 = vpow.pop %v114
      %v116 = vadd.f32 %v115, 1.0
      %v117 = vlog2.pop %v116
      %v118 = vmul.f32 %v117, 0.6931472
      %v119 = vmin.f32 %v118, 9.2103405
      %v120 = vsel %vm87, %v119, 0.0
      %121 = vadd.xlane.f32.xlu0 %v120
      %v122 = vpop.xlane.xlu0 %121
      %v123 = vrot.slane %v122, 4
      %v124 = vadd.f32 %v122, %v123
      %v125 = vrot.slane %v124, 2
      %v126 = vadd.f32 %v124, %v125
      %v127 = vrot.slane %v126, 1
      %v128 = vadd.f32 %v126, %v127
      %s129 = vtos %v128
      %s130 = sadd.f32 %s97, %s129
      %s131 = scalar_lea.vmem [#allocation9], 8
      %v132 = vld [vmem:[%s131] sm:$0xff]
      %v133 = vsub.f32 %v65, %v132
      %v134 = vmul.f32 %v133, %v133
      %v135 = vsel %vm63, %v134, 0.0
      %v136 = vrot.slane %v135, 4
      %v137 = vadd.f32 %v135, %v136
      %v138 = vrot.slane %v137, 2
      %v139 = vadd.f32 %v137, %v138
      %v140 = vrot.slane %v139, 1
      %v141 = vadd.f32 %v139, %v140
      %v142 = vmax.f32 %v141, 1e-30
      %v143 = vlog2.pop %v142
      %v144 = vmul.f32 %v143, 0.6931472
      %v145 = vmul.f32 %v144, 0.8950608
      %v146 = vadd.f32 %v145, 0.45548818
      %v147 = vsub.f32 0.0, %v146
      %v148 = vmul.f32 %v147, 1.442695
      %v149 = vpow.pop %v148
      %v150 = vadd.f32 %v149, 1.0
      %v151 = vlog2.pop %v150
      %v152 = vmul.f32 %v151, 0.6931472
      %v153 = vmin.f32 %v152, 9.2103405
      %v154 = vsel %vm87, %v153, 0.0
      %155 = vadd.xlane.f32.xlu0 %v154
      %v156 = vpop.xlane.xlu0 %155
      %v157 = vrot.slane %v156, 4
      %v158 = vadd.f32 %v156, %v157
      %v159 = vrot.slane %v158, 2
      %v160 = vadd.f32 %v158, %v159
      %v161 = vrot.slane %v160, 1
      %v162 = vadd.f32 %v160, %v161
      %s163 = vtos %v162
      %s164 = sadd.f32 %s130, %s163
      %s165 = scalar_lea.vmem [#allocation9], 16
      %v166 = vld [vmem:[%s165] sm:$0xff]
      %v167 = vsub.f32 %v65, %v166
      %v168 = vmul.f32 %v167, %v167
      %v169 = vsel %vm63, %v168, 0.0
      %v170 = vrot.slane %v169, 4
      %v171 = vadd.f32 %v169, %v170
      %v172 = vrot.slane %v171, 2
      %v173 = vadd.f32 %v171, %v172
      %v174 = vrot.slane %v173, 1
      %v175 = vadd.f32 %v173, %v174
      %v176 = vmax.f32 %v175, 1e-30
      %v177 = vlog2.pop %v176
      %v178 = vmul.f32 %v177, 0.6931472
      %v179 = vmul.f32 %v178, 0.8950608
      %v180 = vadd.f32 %v179, 0.45548818
      %v181 = vsub.f32 0.0, %v180
      %v182 = vmul.f32 %v181, 1.442695
      %v183 = vpow.pop %v182
      %v184 = vadd.f32 %v183, 1.0
      %v185 = vlog2.pop %v184
      %v186 = vmul.f32 %v185, 0.6931472
      %v187 = vmin.f32 %v186, 9.2103405
      %v188 = vsel %vm87, %v187, 0.0
      %189 = vadd.xlane.f32.xlu0 %v188
      %v190 = vpop.xlane.xlu0 %189
      %v191 = vrot.slane %v190, 4
      %v192 = vadd.f32 %v190, %v191
      %v193 = vrot.slane %v192, 2
      %v194 = vadd.f32 %v192, %v193
      %v195 = vrot.slane %v194, 1
      %v196 = vadd.f32 %v194, %v195
      %s197 = vtos %v196
      %s198 = sadd.f32 %s164, %s197
      %s199 = scalar_lea.vmem [#allocation9], 24
      %v200 = vld [vmem:[%s199] sm:$0xff]
      %v201 = vsub.f32 %v65, %v200
      %v202 = vmul.f32 %v201, %v201
      %v203 = vsel %vm63, %v202, 0.0
      %v204 = vrot.slane %v203, 4
      %v205 = vadd.f32 %v203, %v204
      %v206 = vrot.slane %v205, 2
      %v207 = vadd.f32 %v205, %v206
      %v208 = vrot.slane %v207, 1
      %v209 = vadd.f32 %v207, %v208
      %v210 = vmax.f32 %v209, 1e-30
      %v211 = vlog2.pop %v210
      %v212 = vmul.f32 %v211, 0.6931472
      %v213 = vmul.f32 %v212, 0.8950608
      %v214 = vadd.f32 %v213, 0.45548818
      %v215 = vsub.f32 0.0, %v214
      %v216 = vmul.f32 %v215, 1.442695
      %v217 = vpow.pop %v216
      %v218 = vadd.f32 %v217, 1.0
      %v219 = vlog2.pop %v218
      %v220 = vmul.f32 %v219, 0.6931472
      %v221 = vmin.f32 %v220, 9.2103405
      %v222 = vsel %vm87, %v221, 0.0
      %223 = vadd.xlane.f32.xlu0 %v222
      %v224 = vpop.xlane.xlu0 %223
      %v225 = vrot.slane %v224, 4
      %v226 = vadd.f32 %v224, %v225
      %v227 = vrot.slane %v226, 2
      %v228 = vadd.f32 %v226, %v227
      %v229 = vrot.slane %v228, 1
      %v230 = vadd.f32 %v228, %v229
      %s231 = vtos %v230
      %s232 = sadd.f32 %s198, %s231
      %s233 = smul.f32 %s232, 0.025
      %s234 = scalar_lea.smem [#allocation3], 0
      %235 = sst [smem:[%s234]] %s233
    $region33: #{tpu_custom_call.1} parent=1 // pred_fallthru
      _
    %v236 = vld [vmem:[%s3] sm:$0xf]
    %v237 = vld [vmem:[#allocation2] sm:$0xff]
    %vm238 = vcmask 261120
    %v240 = vsel %vm238, %v236, 0
    %242 = vmatprep.subr.bf16.mxu0 0
    %243 = vmatpush1.bf16.xpose.msra.mxu0 %v240
    %244 = vmatprep.subr.bf16.mxu0 0
    %245 = vmatpush1.bf16.xpose.msra.mxu0 0
    %246 = vmatprep.subr.bf16.mxu0 0
    %247 = vmatpush1.bf16.xpose.msra.mxu0 0
    %248 = vmatprep.subr.bf16.mxu0 0
    %249 = vmatpush1.bf16.xpose.msra.mxu0 0
    %250 = vmatprep.subr.bf16.mxu0 0
    %251 = vmatpush1.bf16.xpose.msra.mxu0 0
    %252 = vmatprep.subr.bf16.mxu0 0
    %253 = vmatpush1.bf16.xpose.msra.mxu0 0
    %254 = vmatprep.subr.bf16.mxu0 0
    %255 = vmatpush1.bf16.xpose.msra.mxu0 0
    %256 = vmatprep.subr.bf16.mxu0 0
    %257 = vmatpush1.bf16.xpose.msra.mxu0 0
    %258 = vmatprep.subr.bf16.mxu0 0
    %259 = vmatpush1.bf16.xpose.msra.mxu0 0
    %260 = vmatprep.subr.bf16.mxu0 0
    %261 = vmatpush1.bf16.xpose.msra.mxu0 0
    %262 = vmatprep.subr.bf16.mxu0 0
    %263 = vmatpush1.bf16.xpose.msra.mxu0 0
    %264 = vmatprep.subr.bf16.mxu0 0
    %265 = vmatpush1.bf16.xpose.msra.mxu0 0
    %266 = vmatprep.subr.bf16.mxu0 0
    %267 = vmatpush1.bf16.xpose.msra.mxu0 0
    %268 = vmatprep.subr.bf16.mxu0 0
    %269 = vmatpush1.bf16.xpose.msra.mxu0 0
    %270 = vmatprep.subr.bf16.mxu0 0
    %271 = vmatpush1.bf16.xpose.msra.mxu0 0
    %272 = vmatprep.subr.bf16.mxu0 0
    %273 = vmatpush1.bf16.xpose.msra.mxu0 0
    %274 = vmatprep.mubr.bf16.mxu0 0
    %275 = vmatmul.mubr.bf16.gmra.mrb[0].mxu0 %v240
    %v276 = vpop.f32.mrb[0].mxu0
    %v277 = vadd.f32 0.0, %v276
    %v278 = vpop.f32.mrb[0].mxu0
    %v279 = vpop.f32.mrb[0].mxu0
    %v280 = vpop.f32.mrb[0].mxu0
    %281 = vdwg.mxu0
    %v282 = vadd.f32 %v237, %v277
    %vm283 = vcmask 64512
    %284 = vst.msk [vmem:[#allocation2] sm:$0xff] %vm283, %v282
    // Predicated region
    $region34: #{tpu_custom_call.1} parent=1 // pred_check
      %p285 = pneg %p59
    $region35: #{tpu_custom_call.1} parent=1 // pred_check_branch
      %287 = sbr.rel (%p285) target = $region37
    $region36: #{tpu_custom_call.1} parent=1 // pred_region
      %s288 = sld [smem:[#allocation3]]
      %s289 = scalar_lea.smem [#allocation10], 0
      %290 = sst [smem:[%s289]] %s288
      %v291 = vld [vmem:[#allocation2] sm:$0xff]
      %v292 = vlaneseq
      %v293 = vshrl.u32 %v292, 7
      %v294 = vlaneseq
      %v295 = vand.u32 %v294, 127
      %vm296 = vcmp.eq.s32.totalorder %v293, %v295
      %v297 = vsel %vm296, 1, 0
      %v298 = vcvt.s32.f32 %v297
      %v299 = vmul.f32 %v291, %v298
      %v300 = vsel %vm283, %v299, 0.0
      %v301 = vrot.slane %v300, 4
      %v302 = vadd.f32 %v300, %v301
      %v303 = vrot.slane %v302, 2
      %v304 = vadd.f32 %v302, %v303
      %v305 = vrot.slane %v304, 1
      %v306 = vadd.f32 %v304, %v305
      %307 = vadd.xlane.f32.xlu0 %v300
      %v308 = vpop.xlane.xlu0 %307
      %v309 = vadd.f32 %v308, %v306
      %v310 = vmul.f32 %v291, 2.0
      %v311 = vsub.f32 %v309, %v310
      %v312 = vmax.f32 %v311, 0.0
      %v313 = vrsqrt.pop %v312
      %v314 = vmul.f32 %v312, %v313
      %vm315 = vcmp.eq.f32.partialorder %v312, inf
      %v316 = vsel %vm315, %v312, %v314
      %vm317 = vcmp.eq.f32.partialorder %v312, 0.0
      %v318 = vand.u32 %v312, 2147483648
      %v319 = vsel %vm317, %v318, %v316
      %v320 = vld [vmem:[#allocation4] sm:$0xff]
      %321 = vxpose.xlu0.b32.start [1/16] %v320, 128
      %322 = vxpose.xlu0.b32.cont [2/16] 0.0, 128
      %323 = vxpose.xlu0.b32.cont [3/16] 0.0, 128
      %324 = vxpose.xlu0.b32.cont [4/16] 0.0, 128
      %325 = vxpose.xlu0.b32.cont [5/16] 0.0, 128
      %326 = vxpose.xlu0.b32.cont [6/16] 0.0, 128
      %327 = vxpose.xlu0.b32.cont [7/16] 0.0, 128
      %328 = vxpose.xlu0.b32.cont [8/16] 0.0, 128
      %329 = vxpose.xlu0.b32.cont [9/16] 0.0, 128
      %330 = vxpose.xlu0.b32.cont [10/16] 0.0, 128
      %331 = vxpose.xlu0.b32.cont [11/16] 0.0, 128
      %332 = vxpose.xlu0.b32.cont [12/16] 0.0, 128
      %333 = vxpose.xlu0.b32.cont [13/16] 0.0, 128
      %334 = vxpose.xlu0.b32.cont [14/16] 0.0, 128
      %335 = vxpose.xlu0.b32.cont [15/16] 0.0, 128
      %336 = vxpose.xlu0.b32.end [16/16] 0.0, 128
      %v337 = vpop.trf.xlu0
      %v338 = vpop.trf.xlu0
      %v339 = vpop.trf.xlu0
      %v340 = vpop.trf.xlu0
      %v341 = vpop.trf.xlu0
      %v342 = vpop.trf.xlu0
      %v343 = vpop.trf.xlu0
      %v344 = vpop.trf.xlu0
      %v345 = vpop.trf.xlu0
      %v346 = vpop.trf.xlu0
      %v347 = vpop.trf.xlu0
      %v348 = vpop.trf.xlu0
      %v349 = vpop.trf.xlu0
      %v350 = vpop.trf.xlu0
      %v351 = vpop.trf.xlu0
      %v352 = vpop.trf.xlu0
      %v354 = vsel %vm283, %v337, 0
      %356 = vmatprep.subr.mxu0 0.0
      %357 = vmatpush1.msra.mxu0 %v320
      %358 = vmatprep.subr.mxu0 0.0
      %359 = vmatpush1.msra.mxu0 0.0
      %360 = vmatprep.subr.mxu0 0.0
      %361 = vmatpush1.msra.mxu0 0.0
      %362 = vmatprep.subr.mxu0 0.0
      %363 = vmatpush1.msra.mxu0 0.0
      %364 = vmatprep.subr.mxu0 0.0
      %365 = vmatpush1.msra.mxu0 0.0
      %366 = vmatprep.subr.mxu0 0.0
      %367 = vmatpush1.msra.mxu0 0.0
      %368 = vmatprep.subr.mxu0 0.0
      %369 = vmatpush1.msra.mxu0 0.0
      %370 = vmatprep.subr.mxu0 0.0
      %371 = vmatpush1.msra.mxu0 0.0
      %372 = vmatprep.subr.mxu0 0.0
      %373 = vmatpush1.msra.mxu0 0.0
      %374 = vmatprep.subr.mxu0 0.0
      %375 = vmatpush1.msra.mxu0 0.0
      %376 = vmatprep.subr.mxu0 0.0
      %377 = vmatpush1.msra.mxu0 0.0
      %378 = vmatprep.subr.mxu0 0.0
      %379 = vmatpush1.msra.mxu0 0.0
      %380 = vmatprep.subr.mxu0 0.0
      %381 = vmatpush1.msra.mxu0 0.0
      %382 = vmatprep.subr.mxu0 0.0
      %383 = vmatpush1.msra.mxu0 0.0
      %384 = vmatprep.subr.mxu0 0.0
      %385 = vmatpush1.msra.mxu0 0.0
      %386 = vmatprep.subr.mxu0 0.0
      %387 = vmatpush1.msra.mxu0 0.0
      %388 = vmatprep.subr.mxu0 0.0
      %389 = vmatpush1.msra.mxu0 0.0
      %390 = vmatprep.subr.mxu0 0.0
      %391 = vmatpush1.msra.mxu0 0.0
      %392 = vmatprep.subr.mxu0 0.0
      %393 = vmatpush1.msra.mxu0 0.0
      %394 = vmatprep.subr.mxu0 0.0
      %395 = vmatpush1.msra.mxu0 0.0
      %396 = vmatprep.subr.mxu0 0.0
      %397 = vmatpush1.msra.mxu0 0.0
      %398 = vmatprep.subr.mxu0 0.0
      %399 = vmatpush1.msra.mxu0 0.0
      %400 = vmatprep.subr.mxu0 0.0
      %401 = vmatpush1.msra.mxu0 0.0
      %402 = vmatprep.subr.mxu0 0.0
      %403 = vmatpush1.msra.mxu0 0.0
      %404 = vmatprep.subr.mxu0 0.0
      %405 = vmatpush1.msra.mxu0 0.0
      %406 = vmatprep.subr.mxu0 0.0
      %407 = vmatpush1.msra.mxu0 0.0
      %408 = vmatprep.subr.mxu0 0.0
      %409 = vmatpush1.msra.mxu0 0.0
      %410 = vmatprep.subr.mxu0 0.0
      %411 = vmatpush1.msra.mxu0 0.0
      %412 = vmatprep.subr.mxu0 0.0
      %413 = vmatpush1.msra.mxu0 0.0
      %414 = vmatprep.subr.mxu0 0.0
      %415 = vmatpush1.msra.mxu0 0.0
      %416 = vmatprep.subr.mxu0 0.0
      %417 = vmatpush1.msra.mxu0 0.0
      %418 = vmatprep.subr.mxu0 0.0
      %419 = vmatpush1.msra.mxu0 0.0
      %420 = vmatprep.mubr.f32.mxu0 0.0
      %421 = vmatmul.mubr.f32.gmra.mrb[0].mxu0 %v354
      %v422 = vpop.f32.mrb[0].mxu0
      %v423 = vadd.f32 0.0, %v422
      %v424 = vpop.f32.mrb[0].mxu0
      %425 = vdwg.mxu0
      %v426 = vmul.f32 %v320, %v320
      %v427 = vsel %vm283, %v426, 0.0
      %v428 = vrot.slane %v427, 4
      %v429 = vadd.f32 %v427, %v428
      %v430 = vrot.slane %v429, 2
      %v431 = vadd.f32 %v429, %v430
      %v432 = vrot.slane %v431, 1
      %v433 = vadd.f32 %v431, %v432
      %v434 = vmul.f32 %v423, %v298
      %v435 = vsel %vm283, %v434, 0.0
      %436 = vadd.xlane.f32.xlu0 %v435
      %v437 = vpop.xlane.xlu0 %436
      %v438 = vadd.f32 %v437, %v433
      %v439 = vmul.f32 %v423, 2.0
      %v440 = vsub.f32 %v438, %v439
      %v441 = vmax.f32 %v440, 0.0
      %v442 = vrsqrt.pop %v441
      %v443 = vmul.f32 %v441, %v442
      %vm444 = vcmp.eq.f32.partialorder %v441, inf
      %v445 = vsel %vm444, %v441, %v443
      %vm446 = vcmp.eq.f32.partialorder %v441, 0.0
      %v447 = vand.u32 %v441, 2147483648
      %v448 = vsel %vm446, %v447, %v445
      %v449 = vsel %vm283, %v319, 0.0
      %450 = vadd.xlane.f32.xlu0 %v449
      %v451 = vpop.xlane.xlu0 %450
      %v452 = vsel %vm283, %v448, 0.0
      %453 = vadd.xlane.f32.xlu0 %v452
      %v454 = vpop.xlane.xlu0 %453
      %v455 = vmul.f32 %v319, %v319
      %v456 = vsel %vm283, %v455, 0.0
      %457 = vadd.xlane.f32.xlu0 %v456
      %v458 = vpop.xlane.xlu0 %457
      %v459 = vmul.f32 %v448, %v448
      %v460 = vsel %vm283, %v459, 0.0
      %461 = vadd.xlane.f32.xlu0 %v460
      %v462 = vpop.xlane.xlu0 %461
      %v463 = vmul.f32 %v319, %v448
      %v464 = vsel %vm283, %v463, 0.0
      %465 = vadd.xlane.f32.xlu0 %v464
      %v466 = vpop.xlane.xlu0 %465
      %v467 = vmul.f32 %v451, %v454
      %v468 = vmul.f32 %v467, 0.125
      %v469 = vsub.f32 %v466, %v468
      %v470 = vmul.f32 %v451, %v451
      %v471 = vmul.f32 %v470, 0.125
      %v472 = vsub.f32 %v458, %v471
      %v473 = vmul.f32 %v454, %v454
      %v474 = vmul.f32 %v473, 0.125
      %v475 = vsub.f32 %v462, %v474
      %v476 = vmul.f32 %v472, %v475
      %v477 = vmax.f32 %v476, 0.0
      %v478 = vrsqrt.pop %v477
      %v479 = vmul.f32 %v477, %v478
      %vm480 = vcmp.eq.f32.partialorder %v477, inf
      %v481 = vsel %vm480, %v477, %v479
      %vm482 = vcmp.eq.f32.partialorder %v477, 0.0
      %v483 = vand.u32 %v477, 2147483648
      %v484 = vsel %vm482, %v483, %v481
      %v485 = vmax.f32 %v484, 1e-12
      %v486 = vrcp.pop %v485
      %v487 = vmul.f32 %v469, %v486
      %vm488 = vcmask 7168
      %v489 = vsel %vm488, %v487, 0.0
      %490 = vadd.xlane.f32.xlu0 %v489
      %v491 = vpop.xlane.xlu0 %490
      %v492 = vrot.slane %v491, 4
      %v493 = vadd.f32 %v491, %v492
      %v494 = vrot.slane %v493, 2
      %v495 = vadd.f32 %v493, %v494
      %v496 = vrot.slane %v495, 1
      %v497 = vadd.f32 %v495, %v496
      %s498 = vtos %v497
      %s499 = ssub.f32 0.0, %s498
      %s500 = smul.f32 %s499, 0.125
      %s501 = scalar_lea.smem [#allocation11], 0
      %502 = sst [smem:[%s501]] %s500
    $region37: #{tpu_custom_call.1} parent=1 // pred_fallthru
      _
    // Predicated region
    $region38: #{tpu_custom_call.1} parent=1 // pred_check
      _
    $region39: #{tpu_custom_call.1} parent=1 // pred_check_branch
      %504 = sbr.rel (0) target = $region41
    $region40: #{tpu_custom_call.1} parent=1 // pred_region
      %s506 = ssub.s32 16, 16
      %507 = vsyncadd [#allocation6], %s506
      %510 = dma.smem_to_hbm [#allocation10], 16, %s4, [#allocation6]
    $region41: #{tpu_custom_call.1} parent=1 // pred_fallthru
      _
    // Predicated region
    $region42: #{tpu_custom_call.1} parent=1 // pred_check
      _
    $region43: #{tpu_custom_call.1} parent=1 // pred_check_branch
      %512 = sbr.rel (0) target = $region45
    $region44: #{tpu_custom_call.1} parent=1 // pred_region
      %s514 = ssub.s32 16, 16
      %515 = vsyncadd [#allocation12], %s514
      %518 = dma.smem_to_hbm [#allocation11], 16, %s5, [#allocation12]
    $region45: #{tpu_custom_call.1} parent=1 // pred_fallthru
      _
    // Predicated region
    $region46: #{tpu_custom_call.1} parent=1 // pred_check
      _
    $region47: #{tpu_custom_call.1} parent=1 // pred_check_branch
      %520 = sbr.rel (0) target = $region49
    $region48: #{tpu_custom_call.1} parent=1 // pred_region
      %521 = dma.done [#allocation6], 16
    $region49: #{tpu_custom_call.1} parent=1 // pred_fallthru
      _
    // Predicated region
    $region50: #{tpu_custom_call.1} parent=1 // pred_check
      _
    $region51: #{tpu_custom_call.1} parent=1 // pred_check_branch
      %523 = sbr.rel (0) target = $region53
    $region52: #{tpu_custom_call.1} parent=1 // pred_region
      %524 = dma.done [#allocation12], 16
    $region53: #{tpu_custom_call.1} parent=1 // pred_fallthru
      _
    %525 = sfence
    %526 = vsyncpa [#allocation5], 1
    %527 = vsyncpa [#allocation8], 1
    %528 = vsyncpa [#allocation6], 1
    %529 = vsyncpa [#allocation12], 1

</llo_original>
